<compile_context>
chip_gen: v6e
topology: v6e:2x2x1
jax: 0.10.0
libtpu: 0.0.40
codegen_flags: <defaults>
</compile_context>

<pallas_src>
import functools

import jax
import jax.numpy as jnp
from jax.experimental import pallas as pl
from jax.experimental.pallas import tpu as pltpu

SPATIAL_DIMS = 2
D = 2 * SPATIAL_DIMS            # box-regression components per anchor
BETA = 1.0 / 9.0                # SmoothL1Loss beta
TO_REMOVE = 0.0                 # MONAI box size convention (xmax - xmin)
PACK = 2                        # anchor-axis halves folded into sublanes
LANE_TILE = 32768               # lane tile over the packed anchor axis (sweep 16K-64K)
VMEM_LIMIT_BYTES = 40 * 1024 * 1024


def _smooth_l1(d):
    return jnp.where(d < BETA, (0.5 / BETA) * d * d, d - 0.5 * BETA)


def box_loss_kernel(gt_sm, pred_ref, anc_ref, mi_ref, acc_ref, *, num_gt, spatial_dims):
    """One (rows, TN) tile: in-kernel GT gather + encode + SmoothL1; accumulate into acc.

    acc rows [0, K)  : per-anchor summed SmoothL1 loss (foreground anchors only)
    acc rows [K, 2K) : foreground indicator (wrapper sums it for the mean denominator)
    """
    ni = pl.program_id(2)

    @pl.when(ni == 0)
    def _init():
        acc_ref[...] = jnp.zeros_like(acc_ref)

    b = pl.program_id(0)
    sd = spatial_dims
    dd = 2 * sd
    k = mi_ref.shape[0]                 # PACK halves folded into sublanes

    pred = pred_ref[...]                # (dd*k, TN)
    anc = anc_ref[...]                  # (dd*k, TN)
    mi = mi_ref[...]                    # (k, TN)
    fg = mi >= 0

    def gather_comp(d):
        # Gather GT component d for every anchor in the tile straight from the tiny
        # SMEM table (static select-loop over G).  The table is transported as int32
        # bits so the scalar-prefetch path stays integer-typed; one vector bitcast per
        # component restores f32.
        # TODO(synk): for large G (>~64) a one-hot (TN,G)@(G,dd) MXU gather would beat
        # the O(G) select chain; the MXU is completely idle in this kernel.
        base = (b * dd + d) * num_gt
        bits = jnp.full(mi.shape, gt_sm[base], dtype=jnp.int32)
        for g in range(1, num_gt):
            bits = jnp.where(mi == g, gt_sm[base + g], bits)
        return pltpu.bitcast(bits, jnp.float32)

    per_anchor = jnp.zeros(mi.shape, dtype=jnp.float32)
    for c in range(sd):
        anc_min = anc[c * k:(c + 1) * k, :]
        anc_max = anc[(sd + c) * k:(sd + c + 1) * k, :]
        pred_c = pred[c * k:(c + 1) * k, :]
        pred_s = pred[(sd + c) * k:(sd + c + 1) * k, :]
        gt_min = gather_comp(c)
        gt_max = gather_comp(sd + c)

        # BoxCoder.encode_single with weights == (1.0,) * 2 * spatial_dims
        anc_wh = anc_max - anc_min + TO_REMOVE
        inv_wh = 1.0 / anc_wh                       # one divide, reused for ctr & size
        anc_ctr = anc_min + 0.5 * anc_wh
        gt_wh = gt_max - gt_min + TO_REMOVE
        gt_ctr = gt_min + 0.5 * gt_wh

        tgt_c = (gt_ctr - anc_ctr) * inv_wh
        tgt_s = jnp.log(gt_wh * inv_wh)

        per_anchor = (per_anchor
                      + _smooth_l1(jnp.abs(pred_c - tgt_c))
                      + _smooth_l1(jnp.abs(pred_s - tgt_s)))

    # select (not multiply): NaN/Inf from degenerate / padded background boxes is dropped
    acc_ref[:k, :] += jnp.where(fg, per_anchor, 0.0)
    acc_ref[k:, :] += fg.astype(jnp.float32)


def _round_up(x, m):
    return ((x + m - 1) // m) * m


def box_loss(box_regression, gt_boxes, anchors, matched_idxs, *, lane_tile=LANE_TILE):
    """
    box_regression: (B, N, 2*sd) f32   predicted deltas
    gt_boxes:       (B, G,  2*sd) f32  ground-truth boxes (xyxy), G >= 1 per image
    anchors:        (B, N, 2*sd) f32   anchor boxes (xyxy)
    matched_idxs:   (B, N) int32       index into gt_boxes, < 0 means background
    """
    B, N, Dd = box_regression.shape
    sd = Dd // 2
    G = gt_boxes.shape[1]
    K = PACK
    rows = Dd * K

    box_regression = box_regression.astype(jnp.float32)
    anchors = anchors.astype(jnp.float32)
    gt_boxes = gt_boxes.astype(jnp.float32)
    matched_idxs = matched_idxs.astype(jnp.int32)

    # GT table for the in-kernel gather: (B*Dd*G,) int32 bits in SMEM via scalar
    # prefetch; entry (b, d, g) lives at flat index (b*Dd + d)*G + g.
    gt_bits = jax.lax.bitcast_convert_type(
        jnp.transpose(gt_boxes, (0, 2, 1)), jnp.int32).reshape(B * Dd * G)

    # Lane tiling over the packed anchor axis (nk anchors per PACK half).  The tile
    # axis splits into (n_outer 'parallel', n_inner 'arbitrary') so both v7x
    # TensorCores stream even when B is small or odd.
    nk = -(-N // K)
    num_tiles = max(1, -(-nk // lane_tile))
    n_outer = 2 if num_tiles >= 2 else 1
    n_inner = -(-num_tiles // n_outer)
    num_tiles = n_outer * n_inner
    tn = _round_up(-(-nk // num_tiles), 128)
    nk_pad = tn * num_tiles
    n_pad = nk_pad * K

    def pad_last(x, value):
        if x.shape[-1] == n_pad:
            return x
        pads = [(0, 0)] * (x.ndim - 1) + [(0, n_pad - x.shape[-1])]
        return jnp.pad(x, pads, constant_values=value)

    # (B,N,Dd) -> (B,Dd,n_pad) -> (B, Dd*K, nk_pad): the pad + reshape are pure layout
    # ops that fuse into the transpose copy; folding the K anchor halves into sublanes
    # makes each kernel tile a dense (8, tn) f32 vreg slab.
    pred_r = pad_last(jnp.transpose(box_regression, (0, 2, 1)), 0.0).reshape(B, rows, nk_pad)
    anc_r = pad_last(jnp.transpose(anchors, (0, 2, 1)), 0.0).reshape(B, rows, nk_pad)
    mi_r = pad_last(matched_idxs, -1).reshape(B, K, nk_pad)

    def data_idx(b, no, ni, gt):        # scalar-prefetch ref arrives positionally
        return (b, 0, no * n_inner + ni)

    kernel = functools.partial(box_loss_kernel, num_gt=G, spatial_dims=sd)
    partials = pl.pallas_call(
        kernel,
        out_shape=jax.ShapeDtypeStruct((B, n_outer, 2 * K, tn), jnp.float32),
        grid_spec=pltpu.PrefetchScalarGridSpec(
            num_scalar_prefetch=1,
            grid=(B, n_outer, n_inner),
            in_specs=[
                pl.BlockSpec((None, rows, tn), data_idx),     # pred
                pl.BlockSpec((None, rows, tn), data_idx),     # anchors
                pl.BlockSpec((None, K, tn), data_idx),        # matched idxs
            ],
            out_specs=pl.BlockSpec((None, None, 2 * K, tn),
                                   lambda b, no, ni, gt: (b, no, 0, 0)),
        ),
        compiler_params=pltpu.CompilerParams(
            dimension_semantics=("parallel", "parallel", "arbitrary"),
            vmem_limit_bytes=VMEM_LIMIT_BYTES),
    )(gt_bits, pred_r, anc_r, mi_r)

    loss_sum = jnp.sum(partials[:, :, :K, :])
    # fg count: per-lane partials are exact small integers; exact overall up to 2^24 fg.
    fg_count = jnp.sum(partials[:, :, K:, :])
    denom = jnp.maximum(fg_count * Dd, 1.0)
    return jnp.where(fg_count > 0, loss_sum / denom, jnp.float32(0.0))


def box_loss_reference(box_regression, gt_boxes, anchors, matched_idxs):
    """Plain-JAX reference replicating the PyTorch forward exactly (for validation)."""
    sd = box_regression.shape[-1] // 2
    G = gt_boxes.shape[1]
    fg = matched_idxs >= 0
    idx = jnp.clip(matched_idxs, 0, G - 1)
    gt = jnp.take_along_axis(gt_boxes, idx[..., None], axis=1)

    anc_wh = anchors[..., sd:] - anchors[..., :sd] + TO_REMOVE
    anc_ctr = anchors[..., :sd] + 0.5 * anc_wh
    gt_wh = gt[..., sd:] - gt[..., :sd] + TO_REMOVE
    gt_ctr = gt[..., :sd] + 0.5 * gt_wh
    target = jnp.concatenate([(gt_ctr - anc_ctr) / anc_wh, jnp.log(gt_wh / anc_wh)], axis=-1)

    d = jnp.abs(box_regression - target)
    elem = jnp.where(d < BETA, 0.5 * d * d / BETA, d - 0.5 * BETA)
    elem = elem * fg[..., None].astype(jnp.float32)
    n_fg = jnp.sum(fg)
    return jnp.where(n_fg > 0,
                     jnp.sum(elem) / jnp.maximum(n_fg * box_regression.shape[-1], 1),
                     0.0).astype(jnp.float32)


if __name__ == "__main__":
    key = jax.random.PRNGKey(0)
    B, N, G = 2, 300, 5            # N not lane-aligned -> exercises the padding path
    k1, k2, k3, k4, k5, k6 = jax.random.split(key, 6)

    # anchors: valid boxes (min < max)
    anc_min = jax.random.uniform(k1, (B, N, SPATIAL_DIMS), minval=0.0, maxval=50.0)
    anc_sz = jax.random.uniform(k2, (B, N, SPATIAL_DIMS), minval=5.0, maxval=15.0)
    anchors = jnp.concatenate([anc_min, anc_min + anc_sz], axis=-1).astype(jnp.float32)

    # ground-truth boxes: valid boxes
    gt_min = jax.random.uniform(k3, (B, G, SPATIAL_DIMS), minval=0.0, maxval=50.0)
    gt_sz = jax.random.uniform(k4, (B, G, SPATIAL_DIMS), minval=5.0, maxval=20.0)
    gt_boxes = jnp.concatenate([gt_min, gt_min + gt_sz], axis=-1).astype(jnp.float32)

    # predicted box regression deltas
    box_regression = (0.1 * jax.random.normal(k5, (B, N, D))).astype(jnp.float32)

    # matched indices: -1 = background, [0, G) = matched GT index
    matched_idxs = jax.random.randint(k6, (B, N), minval=-1, maxval=G).astype(jnp.int32)

    loss = jax.block_until_ready(
        box_loss(box_regression, gt_boxes, anchors, matched_idxs))
    ref = jax.block_until_ready(
        box_loss_reference(box_regression, gt_boxes, anchors, matched_idxs))

    assert jnp.allclose(loss, ref, rtol=1e-5, atol=1e-5), (loss, ref)
    print("KERNEL_OK")
</pallas_src>

<mosaic_0001>
module attributes {stable_mosaic.version = 11 : i64} {
  func.func @box_loss_kernel(%arg0: i32, %arg1: i32, %arg2: i32, %arg3: memref<40xi32, #tpu.memory_space<smem>>, %arg4: memref<1x8x256xf32, #tpu.memory_space<vmem>>, %arg5: memref<1x8x256xf32, #tpu.memory_space<vmem>>, %arg6: memref<1x2x256xi32, #tpu.memory_space<vmem>>, %arg7: memref<1x1x4x256xf32, #tpu.memory_space<vmem>>) attributes {dimension_semantics = [#tpu.dimension_semantics<parallel>, #tpu.dimension_semantics<parallel>, #tpu.dimension_semantics<arbitrary>], iteration_bounds = array<i64: 2, 1, 1>, scalar_prefetch = 1 : i64, scratch_operands = 0 : i64, tpu.core_type = #tpu.core_type<tc>, window_params = [{transform_indices = @transform_0, window_bounds = array<i64: 1, 8, 256>}, {transform_indices = @transform_1, window_bounds = array<i64: 1, 8, 256>}, {transform_indices = @transform_2, window_bounds = array<i64: 1, 2, 256>}, {transform_indices = @transform_3, window_bounds = array<i64: 1, 1, 4, 256>}]} {
    %c0_i32 = arith.constant 0 : i32
    %0 = arith.cmpi eq, %arg2, %c0_i32 : i32
    %1 = arith.extui %0 : i1 to i32
    %c0_i32_0 = arith.constant 0 : i32
    %2 = arith.cmpi ne, %1, %c0_i32_0 : i32
    scf.if %2 {
      %cst_87 = arith.constant 0.000000e+00 : f32
      %256 = vector.broadcast %cst_87 : f32 to vector<4x256xf32>
      %c0_88 = arith.constant 0 : index
      %c0_89 = arith.constant 0 : index
      %c0_90 = arith.constant 0 : index
      %c0_91 = arith.constant 0 : index
      %257 = vector.load %arg7[%c0_88, %c0_89, %c0_90, %c0_91] : memref<1x1x4x256xf32, #tpu.memory_space<vmem>>, vector<1x1x4x256xf32>
      %258 = vector.shape_cast %257 : vector<1x1x4x256xf32> to vector<4x256xf32>
      %259 = vector.shape_cast %256 : vector<4x256xf32> to vector<1x1x4x256xf32>
      tpu.vector_store %arg7[%c0_88, %c0_89, %c0_90, %c0_91], %259 {strides = array<i32>} : memref<1x1x4x256xf32, #tpu.memory_space<vmem>>, vector<1x1x4x256xf32>,
    } else {
    }
    %c0 = arith.constant 0 : index
    %c0_1 = arith.constant 0 : index
    %c0_2 = arith.constant 0 : index
    %3 = vector.load %arg4[%c0, %c0_1, %c0_2] : memref<1x8x256xf32, #tpu.memory_space<vmem>>, vector<1x8x256xf32>
    %4 = vector.shape_cast %3 : vector<1x8x256xf32> to vector<8x256xf32>
    %c0_3 = arith.constant 0 : index
    %c0_4 = arith.constant 0 : index
    %c0_5 = arith.constant 0 : index
    %5 = vector.load %arg5[%c0_3, %c0_4, %c0_5] : memref<1x8x256xf32, #tpu.memory_space<vmem>>, vector<1x8x256xf32>
    %6 = vector.shape_cast %5 : vector<1x8x256xf32> to vector<8x256xf32>
    %c0_6 = arith.constant 0 : index
    %c0_7 = arith.constant 0 : index
    %c0_8 = arith.constant 0 : index
    %7 = vector.load %arg6[%c0_6, %c0_7, %c0_8] : memref<1x2x256xi32, #tpu.memory_space<vmem>>, vector<1x2x256xi32>
    %8 = vector.shape_cast %7 : vector<1x2x256xi32> to vector<2x256xi32>
    %c0_i32_9 = arith.constant 0 : i32
    %9 = vector.broadcast %c0_i32_9 : i32 to vector<2x256xi32>
    %10 = arith.cmpi sge, %8, %9 : vector<2x256xi32>
    %cst = arith.constant 0.000000e+00 : f32
    %11 = vector.broadcast %cst : f32 to vector<2x256xf32>
    %12 = vector.extract_strided_slice %6 {offsets = [0, 0], sizes = [2, 256], strides = [1, 1]} : vector<8x256xf32> to vector<2x256xf32>
    %13 = vector.extract_strided_slice %6 {offsets = [4, 0], sizes = [2, 256], strides = [1, 1]} : vector<8x256xf32> to vector<2x256xf32>
    %14 = vector.extract_strided_slice %4 {offsets = [0, 0], sizes = [2, 256], strides = [1, 1]} : vector<8x256xf32> to vector<2x256xf32>
    %15 = vector.extract_strided_slice %4 {offsets = [4, 0], sizes = [2, 256], strides = [1, 1]} : vector<8x256xf32> to vector<2x256xf32>
    %c4_i32 = arith.constant 4 : i32
    %16 = arith.muli %arg0, %c4_i32 : i32
    %c0_i32_10 = arith.constant 0 : i32
    %17 = arith.addi %16, %c0_i32_10 : i32
    %c5_i32 = arith.constant 5 : i32
    %18 = arith.muli %17, %c5_i32 : i32
    %19 = arith.index_cast %18 : i32 to index
    %20 = memref.load %arg3[%19] : memref<40xi32, #tpu.memory_space<smem>>
    %21 = vector.broadcast %20 : i32 to vector<2x256xi32>
    %c1_i32 = arith.constant 1 : i32
    %22 = vector.broadcast %c1_i32 : i32 to vector<2x256xi32>
    %23 = arith.cmpi eq, %8, %22 : vector<2x256xi32>
    %c1_i32_11 = arith.constant 1 : i32
    %24 = arith.addi %18, %c1_i32_11 : i32
    %25 = arith.index_cast %24 : i32 to index
    %26 = memref.load %arg3[%25] : memref<40xi32, #tpu.memory_space<smem>>
    %27 = vector.broadcast %26 : i32 to vector<2x256xi32>
    %28 = arith.select %23, %27, %21 : vector<2x256xi1>, vector<2x256xi32>
    %c2_i32 = arith.constant 2 : i32
    %29 = vector.broadcast %c2_i32 : i32 to vector<2x256xi32>
    %30 = arith.cmpi eq, %8, %29 : vector<2x256xi32>
    %c2_i32_12 = arith.constant 2 : i32
    %31 = arith.addi %18, %c2_i32_12 : i32
    %32 = arith.index_cast %31 : i32 to index
    %33 = memref.load %arg3[%32] : memref<40xi32, #tpu.memory_space<smem>>
    %34 = vector.broadcast %33 : i32 to vector<2x256xi32>
    %35 = arith.select %30, %34, %28 : vector<2x256xi1>, vector<2x256xi32>
    %c3_i32 = arith.constant 3 : i32
    %36 = vector.broadcast %c3_i32 : i32 to vector<2x256xi32>
    %37 = arith.cmpi eq, %8, %36 : vector<2x256xi32>
    %c3_i32_13 = arith.constant 3 : i32
    %38 = arith.addi %18, %c3_i32_13 : i32
    %39 = arith.index_cast %38 : i32 to index
    %40 = memref.load %arg3[%39] : memref<40xi32, #tpu.memory_space<smem>>
    %41 = vector.broadcast %40 : i32 to vector<2x256xi32>
    %42 = arith.select %37, %41, %35 : vector<2x256xi1>, vector<2x256xi32>
    %c4_i32_14 = arith.constant 4 : i32
    %43 = vector.broadcast %c4_i32_14 : i32 to vector<2x256xi32>
    %44 = arith.cmpi eq, %8, %43 : vector<2x256xi32>
    %c4_i32_15 = arith.constant 4 : i32
    %45 = arith.addi %18, %c4_i32_15 : i32
    %46 = arith.index_cast %45 : i32 to index
    %47 = memref.load %arg3[%46] : memref<40xi32, #tpu.memory_space<smem>>
    %48 = vector.broadcast %47 : i32 to vector<2x256xi32>
    %49 = arith.select %44, %48, %42 : vector<2x256xi1>, vector<2x256xi32>
    %50 = tpu.bitcast %49 : vector<2x256xi32> -> vector<2x256xf32>
    %c4_i32_16 = arith.constant 4 : i32
    %51 = arith.muli %arg0, %c4_i32_16 : i32
    %c2_i32_17 = arith.constant 2 : i32
    %52 = arith.addi %51, %c2_i32_17 : i32
    %c5_i32_18 = arith.constant 5 : i32
    %53 = arith.muli %52, %c5_i32_18 : i32
    %54 = arith.index_cast %53 : i32 to index
    %55 = memref.load %arg3[%54] : memref<40xi32, #tpu.memory_space<smem>>
    %56 = vector.broadcast %55 : i32 to vector<2x256xi32>
    %c1_i32_19 = arith.constant 1 : i32
    %57 = vector.broadcast %c1_i32_19 : i32 to vector<2x256xi32>
    %58 = arith.cmpi eq, %8, %57 : vector<2x256xi32>
    %c1_i32_20 = arith.constant 1 : i32
    %59 = arith.addi %53, %c1_i32_20 : i32
    %60 = arith.index_cast %59 : i32 to index
    %61 = memref.load %arg3[%60] : memref<40xi32, #tpu.memory_space<smem>>
    %62 = vector.broadcast %61 : i32 to vector<2x256xi32>
    %63 = arith.select %58, %62, %56 : vector<2x256xi1>, vector<2x256xi32>
    %c2_i32_21 = arith.constant 2 : i32
    %64 = vector.broadcast %c2_i32_21 : i32 to vector<2x256xi32>
    %65 = arith.cmpi eq, %8, %64 : vector<2x256xi32>
    %c2_i32_22 = arith.constant 2 : i32
    %66 = arith.addi %53, %c2_i32_22 : i32
    %67 = arith.index_cast %66 : i32 to index
    %68 = memref.load %arg3[%67] : memref<40xi32, #tpu.memory_space<smem>>
    %69 = vector.broadcast %68 : i32 to vector<2x256xi32>
    %70 = arith.select %65, %69, %63 : vector<2x256xi1>, vector<2x256xi32>
    %c3_i32_23 = arith.constant 3 : i32
    %71 = vector.broadcast %c3_i32_23 : i32 to vector<2x256xi32>
    %72 = arith.cmpi eq, %8, %71 : vector<2x256xi32>
    %c3_i32_24 = arith.constant 3 : i32
    %73 = arith.addi %53, %c3_i32_24 : i32
    %74 = arith.index_cast %73 : i32 to index
    %75 = memref.load %arg3[%74] : memref<40xi32, #tpu.memory_space<smem>>
    %76 = vector.broadcast %75 : i32 to vector<2x256xi32>
    %77 = arith.select %72, %76, %70 : vector<2x256xi1>, vector<2x256xi32>
    %c4_i32_25 = arith.constant 4 : i32
    %78 = vector.broadcast %c4_i32_25 : i32 to vector<2x256xi32>
    %79 = arith.cmpi eq, %8, %78 : vector<2x256xi32>
    %c4_i32_26 = arith.constant 4 : i32
    %80 = arith.addi %53, %c4_i32_26 : i32
    %81 = arith.index_cast %80 : i32 to index
    %82 = memref.load %arg3[%81] : memref<40xi32, #tpu.memory_space<smem>>
    %83 = vector.broadcast %82 : i32 to vector<2x256xi32>
    %84 = arith.select %79, %83, %77 : vector<2x256xi1>, vector<2x256xi32>
    %85 = tpu.bitcast %84 : vector<2x256xi32> -> vector<2x256xf32>
    %86 = arith.subf %13, %12 : vector<2x256xf32>
    %cst_27 = arith.constant 0.000000e+00 : f32
    %87 = vector.broadcast %cst_27 : f32 to vector<2x256xf32>
    %88 = arith.addf %86, %87 : vector<2x256xf32>
    %cst_28 = arith.constant 1.000000e+00 : f32
    %89 = vector.broadcast %cst_28 : f32 to vector<2x256xf32>
    %90 = arith.divf %89, %88 : vector<2x256xf32>
    %cst_29 = arith.constant 5.000000e-01 : f32
    %91 = vector.broadcast %cst_29 : f32 to vector<2x256xf32>
    %92 = arith.mulf %91, %88 : vector<2x256xf32>
    %93 = arith.addf %12, %92 : vector<2x256xf32>
    %94 = arith.subf %85, %50 : vector<2x256xf32>
    %cst_30 = arith.constant 0.000000e+00 : f32
    %95 = vector.broadcast %cst_30 : f32 to vector<2x256xf32>
    %96 = arith.addf %94, %95 : vector<2x256xf32>
    %cst_31 = arith.constant 5.000000e-01 : f32
    %97 = vector.broadcast %cst_31 : f32 to vector<2x256xf32>
    %98 = arith.mulf %97, %96 : vector<2x256xf32>
    %99 = arith.addf %50, %98 : vector<2x256xf32>
    %100 = arith.subf %99, %93 : vector<2x256xf32>
    %101 = arith.mulf %100, %90 : vector<2x256xf32>
    %102 = arith.mulf %96, %90 : vector<2x256xf32>
    %103 = math.log %102 : vector<2x256xf32>
    %104 = arith.subf %14, %101 : vector<2x256xf32>
    %105 = math.absf %104 : vector<2x256xf32>
    %cst_32 = arith.constant 0.111111112 : f32
    %106 = vector.broadcast %cst_32 : f32 to vector<2x256xf32>
    %107 = arith.cmpf olt, %105, %106 : vector<2x256xf32>
    %cst_33 = arith.constant 4.500000e+00 : f32
    %108 = vector.broadcast %cst_33 : f32 to vector<2x256xf32>
    %109 = arith.mulf %108, %105 : vector<2x256xf32>
    %110 = arith.mulf %109, %105 : vector<2x256xf32>
    %cst_34 = arith.constant 0.055555556 : f32
    %111 = vector.broadcast %cst_34 : f32 to vector<2x256xf32>
    %112 = arith.subf %105, %111 : vector<2x256xf32>
    %113 = arith.select %107, %110, %112 : vector<2x256xi1>, vector<2x256xf32>
    %114 = arith.addf %11, %113 : vector<2x256xf32>
    %115 = arith.subf %15, %103 : vector<2x256xf32>
    %116 = math.absf %115 : vector<2x256xf32>
    %cst_35 = arith.constant 0.111111112 : f32
    %117 = vector.broadcast %cst_35 : f32 to vector<2x256xf32>
    %118 = arith.cmpf olt, %116, %117 : vector<2x256xf32>
    %cst_36 = arith.constant 4.500000e+00 : f32
    %119 = vector.broadcast %cst_36 : f32 to vector<2x256xf32>
    %120 = arith.mulf %119, %116 : vector<2x256xf32>
    %121 = arith.mulf %120, %116 : vector<2x256xf32>
    %cst_37 = arith.constant 0.055555556 : f32
    %122 = vector.broadcast %cst_37 : f32 to vector<2x256xf32>
    %123 = arith.subf %116, %122 : vector<2x256xf32>
    %124 = arith.select %118, %121, %123 : vector<2x256xi1>, vector<2x256xf32>
    %125 = arith.addf %114, %124 : vector<2x256xf32>
    %126 = vector.extract_strided_slice %6 {offsets = [2, 0], sizes = [2, 256], strides = [1, 1]} : vector<8x256xf32> to vector<2x256xf32>
    %127 = vector.extract_strided_slice %6 {offsets = [6, 0], sizes = [2, 256], strides = [1, 1]} : vector<8x256xf32> to vector<2x256xf32>
    %128 = vector.extract_strided_slice %4 {offsets = [2, 0], sizes = [2, 256], strides = [1, 1]} : vector<8x256xf32> to vector<2x256xf32>
    %129 = vector.extract_strided_slice %4 {offsets = [6, 0], sizes = [2, 256], strides = [1, 1]} : vector<8x256xf32> to vector<2x256xf32>
    %c4_i32_38 = arith.constant 4 : i32
    %130 = arith.muli %arg0, %c4_i32_38 : i32
    %c1_i32_39 = arith.constant 1 : i32
    %131 = arith.addi %130, %c1_i32_39 : i32
    %c5_i32_40 = arith.constant 5 : i32
    %132 = arith.muli %131, %c5_i32_40 : i32
    %133 = arith.index_cast %132 : i32 to index
    %134 = memref.load %arg3[%133] : memref<40xi32, #tpu.memory_space<smem>>
    %135 = vector.broadcast %134 : i32 to vector<2x256xi32>
    %c1_i32_41 = arith.constant 1 : i32
    %136 = vector.broadcast %c1_i32_41 : i32 to vector<2x256xi32>
    %137 = arith.cmpi eq, %8, %136 : vector<2x256xi32>
    %c1_i32_42 = arith.constant 1 : i32
    %138 = arith.addi %132, %c1_i32_42 : i32
    %139 = arith.index_cast %138 : i32 to index
    %140 = memref.load %arg3[%139] : memref<40xi32, #tpu.memory_space<smem>>
    %141 = vector.broadcast %140 : i32 to vector<2x256xi32>
    %142 = arith.select %137, %141, %135 : vector<2x256xi1>, vector<2x256xi32>
    %c2_i32_43 = arith.constant 2 : i32
    %143 = vector.broadcast %c2_i32_43 : i32 to vector<2x256xi32>
    %144 = arith.cmpi eq, %8, %143 : vector<2x256xi32>
    %c2_i32_44 = arith.constant 2 : i32
    %145 = arith.addi %132, %c2_i32_44 : i32
    %146 = arith.index_cast %145 : i32 to index
    %147 = memref.load %arg3[%146] : memref<40xi32, #tpu.memory_space<smem>>
    %148 = vector.broadcast %147 : i32 to vector<2x256xi32>
    %149 = arith.select %144, %148, %142 : vector<2x256xi1>, vector<2x256xi32>
    %c3_i32_45 = arith.constant 3 : i32
    %150 = vector.broadcast %c3_i32_45 : i32 to vector<2x256xi32>
    %151 = arith.cmpi eq, %8, %150 : vector<2x256xi32>
    %c3_i32_46 = arith.constant 3 : i32
    %152 = arith.addi %132, %c3_i32_46 : i32
    %153 = arith.index_cast %152 : i32 to index
    %154 = memref.load %arg3[%153] : memref<40xi32, #tpu.memory_space<smem>>
    %155 = vector.broadcast %154 : i32 to vector<2x256xi32>
    %156 = arith.select %151, %155, %149 : vector<2x256xi1>, vector<2x256xi32>
    %c4_i32_47 = arith.constant 4 : i32
    %157 = vector.broadcast %c4_i32_47 : i32 to vector<2x256xi32>
    %158 = arith.cmpi eq, %8, %157 : vector<2x256xi32>
    %c4_i32_48 = arith.constant 4 : i32
    %159 = arith.addi %132, %c4_i32_48 : i32
    %160 = arith.index_cast %159 : i32 to index
    %161 = memref.load %arg3[%160] : memref<40xi32, #tpu.memory_space<smem>>
    %162 = vector.broadcast %161 : i32 to vector<2x256xi32>
    %163 = arith.select %158, %162, %156 : vector<2x256xi1>, vector<2x256xi32>
    %164 = tpu.bitcast %163 : vector<2x256xi32> -> vector<2x256xf32>
    %c4_i32_49 = arith.constant 4 : i32
    %165 = arith.muli %arg0, %c4_i32_49 : i32
    %c3_i32_50 = arith.constant 3 : i32
    %166 = arith.addi %165, %c3_i32_50 : i32
    %c5_i32_51 = arith.constant 5 : i32
    %167 = arith.muli %166, %c5_i32_51 : i32
    %168 = arith.index_cast %167 : i32 to index
    %169 = memref.load %arg3[%168] : memref<40xi32, #tpu.memory_space<smem>>
    %170 = vector.broadcast %169 : i32 to vector<2x256xi32>
    %c1_i32_52 = arith.constant 1 : i32
    %171 = vector.broadcast %c1_i32_52 : i32 to vector<2x256xi32>
    %172 = arith.cmpi eq, %8, %171 : vector<2x256xi32>
    %c1_i32_53 = arith.constant 1 : i32
    %173 = arith.addi %167, %c1_i32_53 : i32
    %174 = arith.index_cast %173 : i32 to index
    %175 = memref.load %arg3[%174] : memref<40xi32, #tpu.memory_space<smem>>
    %176 = vector.broadcast %175 : i32 to vector<2x256xi32>
    %177 = arith.select %172, %176, %170 : vector<2x256xi1>, vector<2x256xi32>
    %c2_i32_54 = arith.constant 2 : i32
    %178 = vector.broadcast %c2_i32_54 : i32 to vector<2x256xi32>
    %179 = arith.cmpi eq, %8, %178 : vector<2x256xi32>
    %c2_i32_55 = arith.constant 2 : i32
    %180 = arith.addi %167, %c2_i32_55 : i32
    %181 = arith.index_cast %180 : i32 to index
    %182 = memref.load %arg3[%181] : memref<40xi32, #tpu.memory_space<smem>>
    %183 = vector.broadcast %182 : i32 to vector<2x256xi32>
    %184 = arith.select %179, %183, %177 : vector<2x256xi1>, vector<2x256xi32>
    %c3_i32_56 = arith.constant 3 : i32
    %185 = vector.broadcast %c3_i32_56 : i32 to vector<2x256xi32>
    %186 = arith.cmpi eq, %8, %185 : vector<2x256xi32>
    %c3_i32_57 = arith.constant 3 : i32
    %187 = arith.addi %167, %c3_i32_57 : i32
    %188 = arith.index_cast %187 : i32 to index
    %189 = memref.load %arg3[%188] : memref<40xi32, #tpu.memory_space<smem>>
    %190 = vector.broadcast %189 : i32 to vector<2x256xi32>
    %191 = arith.select %186, %190, %184 : vector<2x256xi1>, vector<2x256xi32>
    %c4_i32_58 = arith.constant 4 : i32
    %192 = vector.broadcast %c4_i32_58 : i32 to vector<2x256xi32>
    %193 = arith.cmpi eq, %8, %192 : vector<2x256xi32>
    %c4_i32_59 = arith.constant 4 : i32
    %194 = arith.addi %167, %c4_i32_59 : i32
    %195 = arith.index_cast %194 : i32 to index
    %196 = memref.load %arg3[%195] : memref<40xi32, #tpu.memory_space<smem>>
    %197 = vector.broadcast %196 : i32 to vector<2x256xi32>
    %198 = arith.select %193, %197, %191 : vector<2x256xi1>, vector<2x256xi32>
    %199 = tpu.bitcast %198 : vector<2x256xi32> -> vector<2x256xf32>
    %200 = arith.subf %127, %126 : vector<2x256xf32>
    %cst_60 = arith.constant 0.000000e+00 : f32
    %201 = vector.broadcast %cst_60 : f32 to vector<2x256xf32>
    %202 = arith.addf %200, %201 : vector<2x256xf32>
    %cst_61 = arith.constant 1.000000e+00 : f32
    %203 = vector.broadcast %cst_61 : f32 to vector<2x256xf32>
    %204 = arith.divf %203, %202 : vector<2x256xf32>
    %cst_62 = arith.constant 5.000000e-01 : f32
    %205 = vector.broadcast %cst_62 : f32 to vector<2x256xf32>
    %206 = arith.mulf %205, %202 : vector<2x256xf32>
    %207 = arith.addf %126, %206 : vector<2x256xf32>
    %208 = arith.subf %199, %164 : vector<2x256xf32>
    %cst_63 = arith.constant 0.000000e+00 : f32
    %209 = vector.broadcast %cst_63 : f32 to vector<2x256xf32>
    %210 = arith.addf %208, %209 : vector<2x256xf32>
    %cst_64 = arith.constant 5.000000e-01 : f32
    %211 = vector.broadcast %cst_64 : f32 to vector<2x256xf32>
    %212 = arith.mulf %211, %210 : vector<2x256xf32>
    %213 = arith.addf %164, %212 : vector<2x256xf32>
    %214 = arith.subf %213, %207 : vector<2x256xf32>
    %215 = arith.mulf %214, %204 : vector<2x256xf32>
    %216 = arith.mulf %210, %204 : vector<2x256xf32>
    %217 = math.log %216 : vector<2x256xf32>
    %218 = arith.subf %128, %215 : vector<2x256xf32>
    %219 = math.absf %218 : vector<2x256xf32>
    %cst_65 = arith.constant 0.111111112 : f32
    %220 = vector.broadcast %cst_65 : f32 to vector<2x256xf32>
    %221 = arith.cmpf olt, %219, %220 : vector<2x256xf32>
    %cst_66 = arith.constant 4.500000e+00 : f32
    %222 = vector.broadcast %cst_66 : f32 to vector<2x256xf32>
    %223 = arith.mulf %222, %219 : vector<2x256xf32>
    %224 = arith.mulf %223, %219 : vector<2x256xf32>
    %cst_67 = arith.constant 0.055555556 : f32
    %225 = vector.broadcast %cst_67 : f32 to vector<2x256xf32>
    %226 = arith.subf %219, %225 : vector<2x256xf32>
    %227 = arith.select %221, %224, %226 : vector<2x256xi1>, vector<2x256xf32>
    %228 = arith.addf %125, %227 : vector<2x256xf32>
    %229 = arith.subf %129, %217 : vector<2x256xf32>
    %230 = math.absf %229 : vector<2x256xf32>
    %cst_68 = arith.constant 0.111111112 : f32
    %231 = vector.broadcast %cst_68 : f32 to vector<2x256xf32>
    %232 = arith.cmpf olt, %230, %231 : vector<2x256xf32>
    %cst_69 = arith.constant 4.500000e+00 : f32
    %233 = vector.broadcast %cst_69 : f32 to vector<2x256xf32>
    %234 = arith.mulf %233, %230 : vector<2x256xf32>
    %235 = arith.mulf %234, %230 : vector<2x256xf32>
    %cst_70 = arith.constant 0.055555556 : f32
    %236 = vector.broadcast %cst_70 : f32 to vector<2x256xf32>
    %237 = arith.subf %230, %236 : vector<2x256xf32>
    %238 = arith.select %232, %235, %237 : vector<2x256xi1>, vector<2x256xf32>
    %239 = arith.addf %228, %238 : vector<2x256xf32>
    %c0_71 = arith.constant 0 : index
    %c0_72 = arith.constant 0 : index
    %c0_73 = arith.constant 0 : index
    %c0_74 = arith.constant 0 : index
    %240 = vector.load %arg7[%c0_71, %c0_72, %c0_73, %c0_74] : memref<1x1x4x256xf32, #tpu.memory_space<vmem>>, vector<1x1x2x256xf32>
    %241 = vector.shape_cast %240 : vector<1x1x2x256xf32> to vector<2x256xf32>
    %cst_75 = arith.constant 0.000000e+00 : f32
    %242 = vector.broadcast %cst_75 : f32 to vector<2x256xf32>
    %243 = arith.select %10, %239, %242 : vector<2x256xi1>, vector<2x256xf32>
    %244 = arith.addf %241, %243 : vector<2x256xf32>
    %c0_76 = arith.constant 0 : index
    %c0_77 = arith.constant 0 : index
    %c0_78 = arith.constant 0 : index
    %c0_79 = arith.constant 0 : index
    %245 = vector.load %arg7[%c0_76, %c0_77, %c0_78, %c0_79] : memref<1x1x4x256xf32, #tpu.memory_space<vmem>>, vector<1x1x2x256xf32>
    %246 = vector.shape_cast %245 : vector<1x1x2x256xf32> to vector<2x256xf32>
    %247 = vector.shape_cast %244 : vector<2x256xf32> to vector<1x1x2x256xf32>
    tpu.vector_store %arg7[%c0_76, %c0_77, %c0_78, %c0_79], %247 {strides = array<i32>} : memref<1x1x4x256xf32, #tpu.memory_space<vmem>>, vector<1x1x2x256xf32>,
    %c0_80 = arith.constant 0 : index
    %c0_81 = arith.constant 0 : index
    %c2 = arith.constant 2 : index
    %c0_82 = arith.constant 0 : index
    %248 = vector.load %arg7[%c0_80, %c0_81, %c2, %c0_82] : memref<1x1x4x256xf32, #tpu.memory_space<vmem>>, vector<1x1x2x256xf32>
    %249 = vector.shape_cast %248 : vector<1x1x2x256xf32> to vector<2x256xf32>
    %250 = arith.extui %10 : vector<2x256xi1> to vector<2x256xi32>
    %251 = arith.sitofp %250 : vector<2x256xi32> to vector<2x256xf32>
    %252 = arith.addf %249, %251 : vector<2x256xf32>
    %c0_83 = arith.constant 0 : index
    %c0_84 = arith.constant 0 : index
    %c2_85 = arith.constant 2 : index
    %c0_86 = arith.constant 0 : index
    %253 = vector.load %arg7[%c0_83, %c0_84, %c2_85, %c0_86] : memref<1x1x4x256xf32, #tpu.memory_space<vmem>>, vector<1x1x2x256xf32>
    %254 = vector.shape_cast %253 : vector<1x1x2x256xf32> to vector<2x256xf32>
    %255 = vector.shape_cast %252 : vector<2x256xf32> to vector<1x1x2x256xf32>
    tpu.vector_store %arg7[%c0_83, %c0_84, %c2_85, %c0_86], %255 {strides = array<i32>} : memref<1x1x4x256xf32, #tpu.memory_space<vmem>>, vector<1x1x2x256xf32>,
    return
  }
  func.func @transform_0(%arg0: i32, %arg1: i32, %arg2: i32, %arg3: memref<40xi32, #tpu.memory_space<smem>>) -> (i32, i32, i32) {
    %c1_i32 = arith.constant 1 : i32
    %0 = arith.muli %arg1, %c1_i32 : i32
    %1 = arith.addi %0, %arg2 : i32
    %c0_i32 = arith.constant 0 : i32
    %c0_i32_0 = arith.constant 0 : i32
    return %arg0, %c0_i32, %1 : i32, i32, i32
  }
  func.func @transform_1(%arg0: i32, %arg1: i32, %arg2: i32, %arg3: memref<40xi32, #tpu.memory_space<smem>>) -> (i32, i32, i32) {
    %c1_i32 = arith.constant 1 : i32
    %0 = arith.muli %arg1, %c1_i32 : i32
    %1 = arith.addi %0, %arg2 : i32
    %c0_i32 = arith.constant 0 : i32
    %c0_i32_0 = arith.constant 0 : i32
    return %arg0, %c0_i32, %1 : i32, i32, i32
  }
  func.func @transform_2(%arg0: i32, %arg1: i32, %arg2: i32, %arg3: memref<40xi32, #tpu.memory_space<smem>>) -> (i32, i32, i32) {
    %c1_i32 = arith.constant 1 : i32
    %0 = arith.muli %arg1, %c1_i32 : i32
    %1 = arith.addi %0, %arg2 : i32
    %c0_i32 = arith.constant 0 : i32
    %c0_i32_0 = arith.constant 0 : i32
    return %arg0, %c0_i32, %1 : i32, i32, i32
  }
  func.func @transform_3(%arg0: i32, %arg1: i32, %arg2: i32, %arg3: memref<40xi32, #tpu.memory_space<smem>>) -> (i32, i32, i32, i32) {
    %c0_i32 = arith.constant 0 : i32
    %c0_i32_0 = arith.constant 0 : i32
    %c0_i32_1 = arith.constant 0 : i32
    return %arg0, %arg1, %c0_i32, %c0_i32_0 : i32, i32, i32, i32
  }
}

</mosaic_0001>

<llo_original>
// kernel: tpu_custom_call.1
$region0: #{tpu_custom_call.1}
  #allocation0 [shape = 'u32[]', space=smem, size = 0x4, offset = 0x4, fixed_abs, tag = 'smem constant byte address 0x4 - core index']
  #allocation1 [shape = 'u32[144,128]{1,0:T(1,128)}', space=vmem, size = 0x12000, scoped, tag = 'internal scratch']
  #allocation2 [shape = 's32[1]{0}', space=sflag, size = 0x4, scoped, tag = 'scoped memory for tpu_custom_call.1']
  #allocation3 [shape = 'u8[512]{0}', space=smem, size = 0x200, scoped, tag = 'prefetched SMEM operand 0']
  %s0 = inlined_call_operand.hbm [shape: s32[40], index: 0, kind: input, shape index: {}]
  %s1 = inlined_call_operand.hbm [shape: f32[2,8,256], index: 1, kind: input, shape index: {}]
  %s2 = inlined_call_operand.hbm [shape: f32[2,8,256], index: 2, kind: input, shape index: {}]
  %s3 = inlined_call_operand.hbm [shape: s32[2,2,256], index: 3, kind: input, shape index: {}]
  %s4 = inlined_call_operand.hbm [shape: f32[2,1,4,256], index: 4, kind: output, shape index: {}]
  %s5 = sld [smem:[#allocation0]]
  $region61: #{tpu_custom_call.1} parent=0
    _
  %s7 = ssub.s32 1, %s5
  %s8 = scalar_select 0, %s7, %s5
  %10 = dma.hbm_to_smem %s0, 16, [#allocation3], [#allocation2]
  %11 = dma.done [#allocation2], 16
  %12 = sfence
  $region1: #{tpu_custom_call.1} parent=0
    #allocation4 [shape = 'u8[16384]{0}', space=vmem, size = 0x4000, scoped, tag = 'input window, operand 1']
    #allocation5 [shape = 's32[2]{0}', space=sflag, size = 0x8, scoped, tag = 'scoped memory for tpu_custom_call.1']
    #allocation6 [shape = 's32[2]{0}', space=sflag, size = 0x8, scoped, tag = 'scoped memory for tpu_custom_call.1']
    #allocation7 [shape = 'u8[16384]{0}', space=vmem, size = 0x4000, scoped, tag = 'input window, operand 2']
    #allocation8 [shape = 's32[2]{0}', space=sflag, size = 0x8, scoped, tag = 'scoped memory for tpu_custom_call.1']
    #allocation9 [shape = 'u8[4096]{0}', space=vmem, size = 0x1000, scoped, tag = 'input window, operand 3']
    #allocation10 [shape = 'u8[8192]{0}', space=vmem, size = 0x2000, scoped, tag = 'output window, operand 0']
    %13 = vsyncpa [#allocation5], 0
    %s14 = scalar_lea.sflag [#allocation5], 1
    %15 = vsyncpa %s14, 0
    %16 = vsyncpa [#allocation8], 0
    %s17 = scalar_lea.sflag [#allocation8], 1
    %18 = vsyncpa %s17, 0
    %19 = vsyncpa [#allocation6], 0
    %s20 = scalar_lea.sflag [#allocation6], 1
    %21 = vsyncpa %s20, 0
    loop: start=0, step=1, limit=4
    $region2: #{tpu_custom_call.1} parent=1 // loop_pre_header
      _
    $region3: #{tpu_custom_call.1} parent=1 // loop_header
      %s23 = sphi 0, %s27
      %p24 = scmp.ge.s32.totalorder %s23, 4
      %s30 = sphi 0, %s49
      %s31 = sphi 0, %s45
      %s32 = sphi 0, %s41
      %s33 = sphi 0, %s30
      %s34 = sphi 0, %s31
      %s35 = sphi 0, %s32
      %s36 = sphi 0, %s33
      %s37 = sphi 0, %s34
      %s38 = sphi 0, %s35
      %s56 = sphi 0, %s58
      %s59 = sphi 0, %s56
      %s60 = sphi 0, %s59
      %s76 = sphi 0, %s60
      %s86 = sphi 0, %s88
      %s89 = sphi 0, %s86
      %s90 = sphi 0, %s89
      %s106 = sphi 0, %s90
      %s116 = sphi 0, %s118
      %s119 = sphi 0, %s116
      %s120 = sphi 0, %s119
      %s136 = sphi 0, %s120
      %s144 = sphi 0, %s146
      %s147 = sphi 0, %s144
      %s148 = sphi 0, %s147
      %s164 = sphi 0, %s148
    $region4: #{tpu_custom_call.1} parent=1 // loop_header_branch
      %26 = sbr.rel (%p24) target = $region8
    $region5: #{tpu_custom_call.1} parent=1 // loop_body
      %s28 = ssub.s32 %s23, 1
      %s29 = ssub.s32 %s23, 2
      %s39 = sadd.s32 1, %s32
      %p40 = scmp.ge.s32.totalorder %s39, 1
      %s41 = scalar_select %p40, 0, %s39
      %s42 = sadd.s32 1, %s31
      %s43 = scalar_select %p40, %s42, %s31
      %p44 = scmp.ge.s32.totalorder %s43, 1
      %s45 = scalar_select %p44, 0, %s43
      %s46 = sadd.s32 1, %s30
      %s47 = scalar_select %p44, %s46, %s30
      %p48 = scmp.ge.s32.totalorder %s47, 2
      %s49 = scalar_select %p48, 0, %s47
      %s50 = sadd.s32 %s31, %s32
      %s51 = sadd.s32 %s45, %s41
      %s52 = ssub.s32 %s30, %s49
      %s53 = ssub.s32 %s50, %s51
      %s54 = sor.u32 %s52, %s53
      %p55 = scmp.eq.s32.totalorder %s54, 0
      %s57 = sadd.s32 %s56, 1
      %s58 = scalar_select %p55, %s56, %s57
      %p61 = pneg %p55
      %p62 = scmp.eq.s32.totalorder %s23, 1
      %p63 = por %p61, %p62
      %p64 = scmp.ne.s32.totalorder %s56, %s59
      %p65 = scmp.eq.s32.totalorder %s23, 0
      %p66 = por %p64, %p65
      %p67 = scmp.ne.s32.totalorder %s56, %s59
      %p68 = scmp.eq.s32.totalorder %s28, 1
      %p69 = por %p67, %p68
      %p70 = scmp.ne.s32.totalorder %s59, %s60
      %p71 = scmp.eq.s32.totalorder %s28, 0
      %p72 = por %p70, %p71
      %p73 = scmp.ne.s32.totalorder %s59, %s60
      %p74 = scmp.eq.s32.totalorder %s29, 1
      %p75 = por %p73, %p74
      %p77 = scmp.ne.s32.totalorder %s60, %s76
      %p78 = scmp.eq.s32.totalorder %s29, 0
      %p79 = por %p77, %p78
      %s80 = sadd.s32 %s31, %s32
      %s81 = sadd.s32 %s45, %s41
      %s82 = ssub.s32 %s30, %s49
      %s83 = ssub.s32 %s80, %s81
      %s84 = sor.u32 %s82, %s83
      %p85 = scmp.eq.s32.totalorder %s84, 0
      %s87 = sadd.s32 %s86, 1
      %s88 = scalar_select %p85, %s86, %s87
      %p91 = pneg %p85
      %p92 = scmp.eq.s32.totalorder %s23, 1
      %p93 = por %p91, %p92
      %p94 = scmp.ne.s32.totalorder %s86, %s89
      %p95 = scmp.eq.s32.totalorder %s23, 0
      %p96 = por %p94, %p95
      %p97 = scmp.ne.s32.totalorder %s86, %s89
      %p98 = scmp.eq.s32.totalorder %s28, 1
      %p99 = por %p97, %p98
      %p100 = scmp.ne.s32.totalorder %s89, %s90
      %p101 = scmp.eq.s32.totalorder %s28, 0
      %p102 = por %p100, %p101
      %p103 = scmp.ne.s32.totalorder %s89, %s90
      %p104 = scmp.eq.s32.totalorder %s29, 1
      %p105 = por %p103, %p104
      %p107 = scmp.ne.s32.totalorder %s90, %s106
      %p108 = scmp.eq.s32.totalorder %s29, 0
      %p109 = por %p107, %p108
      %s110 = sadd.s32 %s31, %s32
      %s111 = sadd.s32 %s45, %s41
      %s112 = ssub.s32 %s30, %s49
      %s113 = ssub.s32 %s110, %s111
      %s114 = sor.u32 %s112, %s113
      %p115 = scmp.eq.s32.totalorder %s114, 0
      %s117 = sadd.s32 %s116, 1
      %s118 = scalar_select %p115, %s116, %s117
      %p121 = pneg %p115
      %p122 = scmp.eq.s32.totalorder %s23, 1
      %p123 = por %p121, %p122
      %p124 = scmp.ne.s32.totalorder %s116, %s119
      %p125 = scmp.eq.s32.totalorder %s23, 0
      %p126 = por %p124, %p125
      %p127 = scmp.ne.s32.totalorder %s116, %s119
      %p128 = scmp.eq.s32.totalorder %s28, 1
      %p129 = por %p127, %p128
      %p130 = scmp.ne.s32.totalorder %s119, %s120
      %p131 = scmp.eq.s32.totalorder %s28, 0
      %p132 = por %p130, %p131
      %p133 = scmp.ne.s32.totalorder %s119, %s120
      %p134 = scmp.eq.s32.totalorder %s29, 1
      %p135 = por %p133, %p134
      %p137 = scmp.ne.s32.totalorder %s120, %s136
      %p138 = scmp.eq.s32.totalorder %s29, 0
      %p139 = por %p137, %p138
      %s140 = ssub.s32 %s30, %s49
      %s141 = ssub.s32 %s31, %s45
      %s142 = sor.u32 %s140, %s141
      %p143 = scmp.eq.s32.totalorder %s142, 0
      %s145 = sadd.s32 %s144, 1
      %s146 = scalar_select %p143, %s144, %s145
      %p149 = pneg %p143
      %p150 = scmp.eq.s32.totalorder %s23, 1
      %p151 = por %p149, %p150
      %p152 = scmp.ne.s32.totalorder %s144, %s147
      %p153 = scmp.eq.s32.totalorder %s23, 0
      %p154 = por %p152, %p153
      %p155 = scmp.ne.s32.totalorder %s144, %s147
      %p156 = scmp.eq.s32.totalorder %s28, 1
      %p157 = por %p155, %p156
      %p158 = scmp.ne.s32.totalorder %s147, %s148
      %p159 = scmp.eq.s32.totalorder %s28, 0
      %p160 = por %p158, %p159
      %p161 = scmp.ne.s32.totalorder %s147, %s148
      %p162 = scmp.eq.s32.totalorder %s29, 1
      %p163 = por %p161, %p162
      %p165 = scmp.ne.s32.totalorder %s148, %s164
      %p166 = scmp.eq.s32.totalorder %s29, 0
      %p167 = por %p165, %p166
      %p168 = scmp.le.s32.totalorder 1, %s23
      %p169 = scmp.lt.s32.totalorder %s23, 3
      %p170 = pnand %p168, %p169
      %p171 = pneg %p170
      // Predicated region
      $region9: #{tpu_custom_call.1} parent=5 // pred_check
        _
      $region10: #{tpu_custom_call.1} parent=5 // pred_check_branch
        %173 = sbr.rel (%p170) target = $region12
      $region11: #{tpu_custom_call.1} parent=5 // pred_region
        %s174 = ssub.s32 %s23, 1
      $region12: #{tpu_custom_call.1} parent=5 // pred_fallthru
        _
      %p175 = scmp.lt.s32.totalorder %s23, 2
      // Predicated region
      $region13: #{tpu_custom_call.1} parent=5 // pred_check
        %p176 = pneg %p175
      $region14: #{tpu_custom_call.1} parent=5 // pred_check_branch
        %178 = sbr.rel (%p176) target = $region16
      $region15: #{tpu_custom_call.1} parent=5 // pred_region
        // Predicated region
        $region17: #{tpu_custom_call.1} parent=15 // pred_check
          %p179 = pneg %p66
        $region18: #{tpu_custom_call.1} parent=15 // pred_check_branch
          %181 = sbr.rel (%p179) target = $region20
        $region19: #{tpu_custom_call.1} parent=15 // pred_region
          %s182 = sand.u32 %s56, 1
          %s183 = scalar_lea.sflag [#allocation5], %s182
          %s184 = sand.u32 %s56, 1
          %s185 = smul.addr %s184, 16
          %s186 = scalar_lea.vmem [#allocation4], %s185
          %s187 = sadd.s32 %s31, %s32
          %s188 = smul.u32 2, %s187
          %s190 = ssub.s32 256, 256
          %191 = vsyncadd %s183, %s190
          %s192 = smul.addr %s30, 2
          %s193 = sadd.s32 %s188, %s192
          %s194 = smul.addr %s193, 128
          %s195 = scalar_lea.hbm %s1, %s194
          %s197 = sshll.u32 %s186, 4
          %s198 = int_to_ptr.vmem [resolvable:$true] %s197
          %200 = dma.hbm_to_vmem [thread:$0]  %s195, 256, %s198, %s183
        $region20: #{tpu_custom_call.1} parent=15 // pred_fallthru
          _
        // Predicated region
        $region21: #{tpu_custom_call.1} parent=15 // pred_check
          %p201 = pneg %p96
        $region22: #{tpu_custom_call.1} parent=15 // pred_check_branch
          %203 = sbr.rel (%p201) target = $region24
        $region23: #{tpu_custom_call.1} parent=15 // pred_region
          %s204 = sand.u32 %s23, 1
          %s205 = scalar_lea.sflag [#allocation8], %s204
          %s206 = sand.u32 %s86, 1
          %s207 = smul.addr %s206, 16
          %s208 = scalar_lea.vmem [#allocation7], %s207
          %s209 = sadd.s32 %s31, %s32
          %s210 = smul.u32 2, %s209
          %s212 = ssub.s32 256, 256
          %213 = vsyncadd %s205, %s212
          %s214 = smul.addr %s30, 2
          %s215 = sadd.s32 %s210, %s214
          %s216 = smul.addr %s215, 128
          %s217 = scalar_lea.hbm %s2, %s216
          %s219 = sshll.u32 %s208, 4
          %s220 = int_to_ptr.vmem [resolvable:$true] %s219
          %222 = dma.hbm_to_vmem [thread:$0]  %s217, 256, %s220, %s205
        $region24: #{tpu_custom_call.1} parent=15 // pred_fallthru
          _
        // Predicated region
        $region25: #{tpu_custom_call.1} parent=15 // pred_check
          %p223 = pneg %p126
        $region26: #{tpu_custom_call.1} parent=15 // pred_check_branch
          %225 = sbr.rel (%p223) target = $region28
        $region27: #{tpu_custom_call.1} parent=15 // pred_region
          %s226 = sand.u32 %s23, 1
          %s227 = scalar_lea.sflag [#allocation8], %s226
          %s228 = sand.u32 %s116, 1
          %s229 = smul.addr %s228, 4
          %s230 = scalar_lea.vmem [#allocation9], %s229
          %s231 = sadd.s32 %s31, %s32
          %s232 = smul.u32 2, %s231
          %s234 = ssub.s32 64, 64
          %235 = vsyncadd %s227, %s234
          %s236 = smul.addr %s30, 2
          %s237 = sadd.s32 %s232, %s236
          %s238 = smul.addr %s237, 32
          %s239 = scalar_lea.hbm %s3, %s238
          %s241 = sshll.u32 %s230, 4
          %s242 = int_to_ptr.vmem [resolvable:$true] %s241
          %244 = dma.hbm_to_vmem [thread:$0]  %s239, 64, %s242, %s227
        $region28: #{tpu_custom_call.1} parent=15 // pred_fallthru
          _
      $region16: #{tpu_custom_call.1} parent=5 // pred_fallthru
        _
      %p245 = scmp.le.s32.totalorder 1, %s23
      %p246 = scmp.lt.s32.totalorder %s23, 3
      %p247 = pnand %p245, %p246
      %p248 = pneg %p247
      // Predicated region
      $region29: #{tpu_custom_call.1} parent=5 // pred_check
        _
      $region30: #{tpu_custom_call.1} parent=5 // pred_check_branch
        %250 = sbr.rel (%p247) target = $region32
      $region31: #{tpu_custom_call.1} parent=5 // pred_region
        %s251 = ssub.s32 %s23, 1
        %s252 = sand.u32 %s59, 1
        %s253 = scalar_lea.sflag [#allocation5], %s252
        %s254 = sand.u32 %s59, 1
        %s255 = smul.addr %s254, 16
        %s256 = scalar_lea.vmem [#allocation4], %s255
        // Predicated region
        $region33: #{tpu_custom_call.1} parent=31 // pred_check
          %p257 = pneg %p72
        $region34: #{tpu_custom_call.1} parent=31 // pred_check_branch
          %259 = sbr.rel (%p257) target = $region36
        $region35: #{tpu_custom_call.1} parent=31 // pred_region
          %260 = dma.done %s253, 256
        $region36: #{tpu_custom_call.1} parent=31 // pred_fallthru
          _
        %s261 = sand.u32 %s28, 1
        %s262 = scalar_lea.sflag [#allocation8], %s261
        %s263 = sand.u32 %s89, 1
        %s264 = smul.addr %s263, 16
        %s265 = scalar_lea.vmem [#allocation7], %s264
        // Predicated region
        $region37: #{tpu_custom_call.1} parent=31 // pred_check
          %p266 = pneg %p102
        $region38: #{tpu_custom_call.1} parent=31 // pred_check_branch
          %268 = sbr.rel (%p266) target = $region40
        $region39: #{tpu_custom_call.1} parent=31 // pred_region
          %269 = dma.done %s262, 256
        $region40: #{tpu_custom_call.1} parent=31 // pred_fallthru
          _
        %s270 = sand.u32 %s28, 1
        %s271 = scalar_lea.sflag [#allocation8], %s270
        %s272 = sand.u32 %s119, 1
        %s273 = smul.addr %s272, 4
        %s274 = scalar_lea.vmem [#allocation9], %s273
        // Predicated region
        $region41: #{tpu_custom_call.1} parent=31 // pred_check
          %p275 = pneg %p132
        $region42: #{tpu_custom_call.1} parent=31 // pred_check_branch
          %277 = sbr.rel (%p275) target = $region44
        $region43: #{tpu_custom_call.1} parent=31 // pred_region
          %278 = dma.done %s271, 64
        $region44: #{tpu_custom_call.1} parent=31 // pred_fallthru
          _
        %s279 = sand.u32 %s59, 1
        %s280 = scalar_lea.sflag [#allocation5], %s279
        %s281 = sand.u32 %s59, 1
        %s282 = smul.addr %s281, 16
        %s283 = scalar_lea.vmem [#allocation4], %s282
        %p284 = pneg %p72
        %p285 = pneg %p69
        %s286 = sand.u32 %s28, 1
        %s287 = scalar_lea.sflag [#allocation8], %s286
        %s288 = sand.u32 %s89, 1
        %s289 = smul.addr %s288, 16
        %s290 = scalar_lea.vmem [#allocation7], %s289
        %p291 = pneg %p102
        %p292 = pneg %p99
        %s293 = sand.u32 %s28, 1
        %s294 = scalar_lea.sflag [#allocation8], %s293
        %s295 = sand.u32 %s119, 1
        %s296 = smul.addr %s295, 4
        %s297 = scalar_lea.vmem [#allocation9], %s296
        %p298 = pneg %p132
        %p299 = pneg %p129
        %p300 = pneg %p160
        %p301 = pneg %p157
        %s302 = sand.u32 %s147, 1
        %s303 = scalar_lea.sflag [#allocation6], %s302
        %s304 = sand.u32 %s147, 1
        %s305 = smul.addr %s304, 8
        %s306 = scalar_lea.vmem [#allocation10], %s305
        %s307 = sadd.s32 %s34, %s35
        %s308 = smul.u32 2, %s307
        %s309 = sadd.s32 %s34, %s35
        %s310 = smul.u32 2, %s309
        %s311 = sadd.s32 %s34, %s35
        %s312 = smul.u32 2, %s311
        %p313 = scmp.eq.s32.totalorder %s35, 0
        // Predicated region
        $region45: #{tpu_custom_call.1} parent=31 // pred_check
          %p314 = pneg %p313
        $region46: #{tpu_custom_call.1} parent=31 // pred_check_branch
          %316 = sbr.rel (%p314) target = $region48
        $region47: #{tpu_custom_call.1} parent=31 // pred_region
          %317 = vst [vmem:[%s306] sm:$0xff] 0.0
        $region48: #{tpu_custom_call.1} parent=31 // pred_fallthru
          _
        %v318 = vld [vmem:[%s256] sm:$0xff]
        %v319 = vld [vmem:[%s256 + $0x8] sm:$0xff]
        %v320 = vld [vmem:[%s265] sm:$0xff]
        %v321 = vld [vmem:[%s265 + $0x8] sm:$0xff]
        %v322 = vld [vmem:[%s274] sm:$0xf]
        %vm323 = vcmp.ge.s32.totalorder %v322, 0
        %s324 = smul.u32 %s33, 20
        %s325 = sld [smem:[#allocation3 + %s324]]
        %v326 = vstv %s325
        %vm327 = vcmp.eq.s32.totalorder %v322, 1
        %s328 = sadd.s32 %s324, 1
        %s329 = sld [smem:[#allocation3 + %s328]]
        %v330 = vstv %s329
        %v331 = vsel %vm327, %v330, %v326
        %vm332 = vcmp.eq.s32.totalorder %v322, 2
        %s333 = sadd.s32 %s324, 2
        %s334 = sld [smem:[#allocation3 + %s333]]
        %v335 = vstv %s334
        %v336 = vsel %vm332, %v335, %v331
        %vm337 = vcmp.eq.s32.totalorder %v322, 3
        %s338 = sadd.s32 %s324, 3
        %s339 = sld [smem:[#allocation3 + %s338]]
        %v340 = vstv %s339
        %v341 = vsel %vm337, %v340, %v336
        %vm342 = vcmp.eq.s32.totalorder %v322, 4
        %s343 = sadd.s32 %s324, 4
        %s344 = sld [smem:[#allocation3 + %s343]]
        %v345 = vstv %s344
        %v346 = vsel %vm342, %v345, %v341
        %v348 = vunpack.c.l.s4 1983009808
        %v349 = vunpack.c.0.s8 %v348
        %v350 = vlaneseq
        %v351 = vshrl.u32 %v350, 7
        %v352 = vsub.s32 %v349, %v351
        %v353 = vrot.slane %v346, %v352
        %v354 = vcombine.high %v353, %v353
        %s357 = smul.u32 %s33, 4
        %s358 = sadd.s32 %s357, 2
        %s359 = smul.u32 %s358, 5
        %s360 = sld [smem:[#allocation3 + %s359]]
        %v361 = vstv %s360
        %s362 = sadd.s32 %s359, 1
        %s363 = sld [smem:[#allocation3 + %s362]]
        %v364 = vstv %s363
        %v365 = vsel %vm327, %v364, %v361
        %s366 = sadd.s32 %s359, 2
        %s367 = sld [smem:[#allocation3 + %s366]]
        %v368 = vstv %s367
        %v369 = vsel %vm332, %v368, %v365
        %s370 = sadd.s32 %s359, 3
        %s371 = sld [smem:[#allocation3 + %s370]]
        %v372 = vstv %s371
        %v373 = vsel %vm337, %v372, %v369
        %s374 = sadd.s32 %s359, 4
        %s375 = sld [smem:[#allocation3 + %s374]]
        %v376 = vstv %s375
        %v377 = vsel %vm342, %v376, %v373
        %v379 = vunpack.c.l.s4 1983009808
        %v380 = vunpack.c.0.s8 %v379
        %v381 = vlaneseq
        %v382 = vshrl.u32 %v381, 7
        %v383 = vsub.s32 %v380, %v382
        %v384 = vrot.slane %v377, %v383
        %v385 = vcombine.high %v384, %v384
        %v390 = vrot.slane %v320, 4
        %v391 = vrot.slane %v321, 4
        %v394 = vsub.f32 %v320, %v390
        %v395 = vsub.f32 %v321, %v391
        %v396 = vadd.f32 %v394, 0.0
        %v397 = vadd.f32 %v395, 0.0
        %v398 = vrcp.pop %v396
        %v399 = vmul.f32 1.0, %v398
        %v400 = vrcp.pop %v397
        %v401 = vmul.f32 1.0, %v400
        %v402 = vmul.f32 %v396, 0.5
        %v403 = vmul.f32 %v397, 0.5
        %v406 = vrot.slane %v402, 4
        %v407 = vrot.slane %v403, 4
        %v410 = vadd.f32 %v320, %v406
        %v411 = vadd.f32 %v321, %v407
        %v412 = vsub.f32 %v384, %v353
        %v413 = vsub.f32 %v385, %v354
        %v414 = vadd.f32 %v412, 0.0
        %v415 = vadd.f32 %v413, 0.0
        %v416 = vmul.f32 %v414, 0.5
        %v417 = vmul.f32 %v415, 0.5
        %v418 = vadd.f32 %v353, %v416
        %v419 = vadd.f32 %v354, %v417
        %v420 = vsub.f32 %v418, %v410
        %v421 = vsub.f32 %v419, %v411
        %v424 = vrot.slane %v399, 4
        %v425 = vrot.slane %v401, 4
        %v428 = vmul.f32 %v420, %v424
        %v429 = vmul.f32 %v421, %v425
        %v430 = vmul.f32 %v414, %v424
        %v431 = vmul.f32 %v415, %v425
        %v432 = vlog2.pop %v430
        %v433 = vmul.f32 %v432, 0.6931472
        %v434 = vlog2.pop %v431
        %v435 = vmul.f32 %v434, 0.6931472
        %v436 = vsub.f32 %v318, %v428
        %v437 = vsub.f32 %v319, %v429
        %v438 = vand.u32 2147483647, %v436
        %v439 = vand.u32 2147483647, %v437
        %vm440 = vcmp.lt.f32.partialorder %v438, 0.11111111
        %vm441 = vcmp.lt.f32.partialorder %v439, 0.11111111
        %v442 = vmul.f32 %v438, 4.5
        %v443 = vmul.f32 %v439, 4.5
        %v444 = vmul.f32 %v442, %v438
        %v445 = vmul.f32 %v443, %v439
        %v446 = vsub.f32 %v438, 0.055555556
        %v447 = vsub.f32 %v439, 0.055555556
        %v448 = vsel %vm440, %v444, %v446
        %v449 = vsel %vm441, %v445, %v447
        %v450 = vadd.f32 %v448, 0.0
        %v451 = vadd.f32 %v449, 0.0
        %v454 = vrot.slane %v433, 4
        %v455 = vrot.slane %v435, 4
        %v458 = vsub.f32 %v318, %v454
        %v459 = vsub.f32 %v319, %v455
        %v460 = vand.u32 2147483647, %v458
        %v461 = vand.u32 2147483647, %v459
        %vm462 = vcmp.lt.f32.partialorder %v460, 0.11111111
        %vm463 = vcmp.lt.f32.partialorder %v461, 0.11111111
        %v464 = vmul.f32 %v460, 4.5
        %v465 = vmul.f32 %v461, 4.5
        %v466 = vmul.f32 %v464, %v460
        %v467 = vmul.f32 %v465, %v461
        %v468 = vsub.f32 %v460, 0.055555556
        %v469 = vsub.f32 %v461, 0.055555556
        %v470 = vsel %vm462, %v466, %v468
        %v471 = vsel %vm463, %v467, %v469
        %v474 = vrot.slane %v470, 4
        %v475 = vrot.slane %v471, 4
        %v478 = vadd.f32 %v450, %v474
        %v479 = vadd.f32 %v451, %v475
        %s480 = sadd.s32 %s357, 1
        %s481 = smul.u32 %s480, 5
        %s482 = sld [smem:[#allocation3 + %s481]]
        %v483 = vstv %s482
        %s484 = sadd.s32 %s481, 1
        %s485 = sld [smem:[#allocation3 + %s484]]
        %v486 = vstv %s485
        %v487 = vsel %vm327, %v486, %v483
        %s488 = sadd.s32 %s481, 2
        %s489 = sld [smem:[#allocation3 + %s488]]
        %v490 = vstv %s489
        %v491 = vsel %vm332, %v490, %v487
        %s492 = sadd.s32 %s481, 3
        %s493 = sld [smem:[#allocation3 + %s492]]
        %v494 = vstv %s493
        %v495 = vsel %vm337, %v494, %v491
        %s496 = sadd.s32 %s481, 4
        %s497 = sld [smem:[#allocation3 + %s496]]
        %v498 = vstv %s497
        %v499 = vsel %vm342, %v498, %v495
        %v501 = vunpack.c.l.s4 1983009808
        %v502 = vunpack.c.0.s8 %v501
        %v503 = vlaneseq
        %v504 = vshrl.u32 %v503, 7
        %v505 = vsub.s32 %v502, %v504
        %v506 = vrot.slane %v499, %v505
        %v507 = vcombine.high %v506, %v506
        %s510 = sadd.s32 %s357, 3
        %s511 = smul.u32 %s510, 5
        %s512 = sld [smem:[#allocation3 + %s511]]
        %v513 = vstv %s512
        %s514 = sadd.s32 %s511, 1
        %s515 = sld [smem:[#allocation3 + %s514]]
        %v516 = vstv %s515
        %v517 = vsel %vm327, %v516, %v513
        %s518 = sadd.s32 %s511, 2
        %s519 = sld [smem:[#allocation3 + %s518]]
        %v520 = vstv %s519
        %v521 = vsel %vm332, %v520, %v517
        %s522 = sadd.s32 %s511, 3
        %s523 = sld [smem:[#allocation3 + %s522]]
        %v524 = vstv %s523
        %v525 = vsel %vm337, %v524, %v521
        %s526 = sadd.s32 %s511, 4
        %s527 = sld [smem:[#allocation3 + %s526]]
        %v528 = vstv %s527
        %v529 = vsel %vm342, %v528, %v525
        %v531 = vunpack.c.l.s4 1983009808
        %v532 = vunpack.c.0.s8 %v531
        %v533 = vlaneseq
        %v534 = vshrl.u32 %v533, 7
        %v535 = vsub.s32 %v532, %v534
        %v536 = vrot.slane %v529, %v535
        %v537 = vcombine.high %v536, %v536
        %v540 = vsub.f32 %v536, %v506
        %v541 = vsub.f32 %v537, %v507
        %v542 = vadd.f32 %v540, 0.0
        %v543 = vadd.f32 %v541, 0.0
        %v544 = vmul.f32 %v542, 0.5
        %v545 = vmul.f32 %v543, 0.5
        %v546 = vadd.f32 %v506, %v544
        %v547 = vadd.f32 %v507, %v545
        %v550 = vrot.slane %v410, 2
        %v551 = vrot.slane %v411, 2
        %v554 = vsub.f32 %v546, %v550
        %v555 = vsub.f32 %v547, %v551
        %v556 = vrot.slane %v399, 6
        %v557 = vrot.slane %v401, 6
        %v560 = vmul.f32 %v554, %v556
        %v561 = vmul.f32 %v555, %v557
        %v562 = vmul.f32 %v542, %v556
        %v563 = vmul.f32 %v543, %v557
        %v564 = vlog2.pop %v562
        %v565 = vmul.f32 %v564, 0.6931472
        %v566 = vlog2.pop %v563
        %v567 = vmul.f32 %v566, 0.6931472
        %v570 = vrot.slane %v560, 6
        %v571 = vrot.slane %v561, 6
        %v574 = vsub.f32 %v318, %v570
        %v575 = vsub.f32 %v319, %v571
        %v576 = vand.u32 2147483647, %v574
        %v577 = vand.u32 2147483647, %v575
        %vm578 = vcmp.lt.f32.partialorder %v576, 0.11111111
        %vm579 = vcmp.lt.f32.partialorder %v577, 0.11111111
        %v580 = vmul.f32 %v576, 4.5
        %v581 = vmul.f32 %v577, 4.5
        %v582 = vmul.f32 %v580, %v576
        %v583 = vmul.f32 %v581, %v577
        %v584 = vsub.f32 %v576, 0.055555556
        %v585 = vsub.f32 %v577, 0.055555556
        %v586 = vsel %vm578, %v582, %v584
        %v587 = vsel %vm579, %v583, %v585
        %v590 = vrot.slane %v586, 2
        %v591 = vrot.slane %v587, 2
        %v594 = vadd.f32 %v478, %v590
        %v595 = vadd.f32 %v479, %v591
        %v598 = vrot.slane %v565, 2
        %v599 = vrot.slane %v567, 2
        %v602 = vsub.f32 %v318, %v598
        %v603 = vsub.f32 %v319, %v599
        %v604 = vand.u32 2147483647, %v602
        %v605 = vand.u32 2147483647, %v603
        %vm606 = vcmp.lt.f32.partialorder %v604, 0.11111111
        %vm607 = vcmp.lt.f32.partialorder %v605, 0.11111111
        %v608 = vmul.f32 %v604, 4.5
        %v609 = vmul.f32 %v605, 4.5
        %v610 = vmul.f32 %v608, %v604
        %v611 = vmul.f32 %v609, %v605
        %v612 = vsub.f32 %v604, 0.055555556
        %v613 = vsub.f32 %v605, 0.055555556
        %v614 = vsel %vm606, %v610, %v612
        %v615 = vsel %vm607, %v611, %v613
        %v618 = vrot.slane %v614, 6
        %v619 = vrot.slane %v615, 6
        %v622 = vadd.f32 %v594, %v618
        %v623 = vadd.f32 %v595, %v619
        %v624 = vld [vmem:[%s306] sm:$0x33]
        %v627 = vcombine.low %v622, %v623
        %v629 = vunpack.c.l.s4 1983009808
        %v630 = vunpack.c.0.s8 %v629
        %v631 = vlaneseq
        %v632 = vshrl.u32 %v631, 7
        %v633 = vsub.s32 %v630, %v632
        %v634 = vrot.slane %v627, %v633
        %v636 = vsel %vm323, %v634, 0.0
        %v639 = vunpack.c.l.s4 1983009808
        %v640 = vunpack.c.0.s8 %v639
        %v641 = vlaneseq
        %v642 = vshrl.u32 %v641, 7
        %v643 = vsub.s32 %v640, %v642
        %v644 = vrot.slane %v636, %v643
        %v646 = vadd.f32 %v624, %v644
        %647 = vst [vmem:[%s306] sm:$0x33] %v646
        %v648 = vld [vmem:[%s306] sm:$0xcc]
        %v649 = vsel %vm323, 1, 0
        %v650 = vcvt.s32.f32 %v649
        %v652 = vcombine.low %v650, %v650
        %v654 = vunpack.c.l.s4 1983009808
        %v655 = vunpack.c.0.s8 %v654
        %v656 = vlaneseq
        %v657 = vshrl.u32 %v656, 7
        %v658 = vsub.s32 %v655, %v657
        %v659 = vrot.slane %v652, %v658
        %v661 = vadd.f32 %v648, %v659
        %662 = vst [vmem:[%s306] sm:$0xcc] %v661
        %s663 = sand.u32 %s147, 1
        %s664 = scalar_lea.sflag [#allocation6], %s663
        %s665 = sand.u32 %s147, 1
        %s666 = smul.addr %s665, 8
        %s667 = scalar_lea.vmem [#allocation10], %s666
        // Predicated region
        $region49: #{tpu_custom_call.1} parent=31 // pred_check
          %p668 = pneg %p157
        $region50: #{tpu_custom_call.1} parent=31 // pred_check_branch
          %670 = sbr.rel (%p668) target = $region52
        $region51: #{tpu_custom_call.1} parent=31 // pred_region
          %s672 = ssub.s32 128, 128
          %673 = vsyncadd %s664, %s672
          %s674 = smul.addr %s34, 2
          %s675 = smul.addr %s33, 2
          %s676 = sadd.s32 %s674, %s675
          %s677 = smul.addr %s676, 64
          %s678 = scalar_lea.hbm %s4, %s677
          %s680 = sshll.u32 %s667, 4
          %s681 = int_to_ptr.vmem [resolvable:$true] %s680
          %683 = dma.vmem_to_hbm [thread:$0]  %s681, 128, %s678, %s664
        $region52: #{tpu_custom_call.1} parent=31 // pred_fallthru
          _
      $region32: #{tpu_custom_call.1} parent=5 // pred_fallthru
        _
      %p684 = scmp.le.s32.totalorder 2, %s23
      // Predicated region
      $region53: #{tpu_custom_call.1} parent=5 // pred_check
        %p685 = pneg %p684
      $region54: #{tpu_custom_call.1} parent=5 // pred_check_branch
        %687 = sbr.rel (%p685) target = $region56
      $region55: #{tpu_custom_call.1} parent=5 // pred_region
        %s688 = ssub.s32 %s23, 2
        // Predicated region
        $region57: #{tpu_custom_call.1} parent=55 // pred_check
          %p689 = pneg %p163
        $region58: #{tpu_custom_call.1} parent=55 // pred_check_branch
          %691 = sbr.rel (%p689) target = $region60
        $region59: #{tpu_custom_call.1} parent=55 // pred_region
          %s692 = sand.u32 %s148, 1
          %s693 = scalar_lea.sflag [#allocation6], %s692
          %s694 = sand.u32 %s148, 1
          %s695 = smul.addr %s694, 8
          %s696 = scalar_lea.vmem [#allocation10], %s695
          %697 = dma.done %s693, 128
        $region60: #{tpu_custom_call.1} parent=55 // pred_fallthru
          _
      $region56: #{tpu_custom_call.1} parent=5 // pred_fallthru
        _
    $region6: #{tpu_custom_call.1} parent=1 // loop_footer
      %s27 = sadd.s32 1, %s23
    $region7: #{tpu_custom_call.1} parent=1 // loop_footer_branch
      %22 = sbr.rel target = $region3
    $region8: #{tpu_custom_call.1} parent=1 // loop_exit
      _
    %698 = vsyncpa [#allocation5], 1
    %s699 = scalar_lea.sflag [#allocation5], 1
    %700 = vsyncpa %s699, 1
    %701 = vsyncpa [#allocation8], 1
    %s702 = scalar_lea.sflag [#allocation8], 1
    %703 = vsyncpa %s702, 1
    %704 = vsyncpa [#allocation6], 1
    %s705 = scalar_lea.sflag [#allocation6], 1
    %706 = vsyncpa %s705, 1

</llo_original>
